<compile_context>
chip_gen: v7x
topology: tpu7x:2x2x1
jax: 0.10.0
libtpu: 0.0.40
codegen_flags: <defaults>
</compile_context>

<pallas_src>
import functools

import jax
import jax.numpy as jnp
from jax.experimental import pallas as pl
from jax.experimental.pallas import tpu as pltpu


def _round_up(v, m):
    return (v + m - 1) // m * m


def _trip_center_kernel(x_ref, ct_ref, cc_ref, lab_ref, oth_ref, par_ref,
                        out_ref, *, batch, inv_b):
    i = pl.program_id(0)

    @pl.when(i == 0)
    def _():
        out_ref[...] = jnp.zeros_like(out_ref)

    x = x_ref[...]                       # (b_t, d)   native dtype (f32 or bf16)
    ct = ct_ref[...]                     # (d, C)     native dtype, pre-transposed
    cc = cc_ref[...]                     # (1, C)     f32, precomputed ||c_j||^2
    labels = lab_ref[...]                # (b_t, 1)   int32
    other = oth_ref[...]                 # (b_t, 1)   int32

    b_t = x.shape[0]
    c = ct.shape[1]

    margin = par_ref[0, 0]
    w = par_ref[0, 1]

    # MXU matmul in the input dtype, f32 accumulate.  No (B, C) distmat.
    xc = jnp.dot(x, ct, preferred_element_type=jnp.float32)      # (b_t, C)

    xf = x.astype(jnp.float32)
    xx = jnp.sum(xf * xf, axis=1, keepdims=True)                 # (b_t, 1)

    classes = jax.lax.broadcasted_iota(jnp.int32, (b_t, c), 1)
    wm = (jnp.where(classes == labels, w, 0.0)
          - jnp.where(classes == other, 1.0 - w, 0.0))           # (b_t, C) f32

    g = jnp.sum(wm * (cc - 2.0 * xc), axis=1, keepdims=True)     # (b_t, 1)
    per = jnp.maximum(margin + (2.0 * w - 1.0) * xx + g, 0.0)    # (b_t, 1)

    # Mask ragged-tail rows (global index >= batch): they hold unspecified data.
    rows = i * b_t + jax.lax.broadcasted_iota(jnp.int32, (b_t, 1), 0)
    per = jnp.where(rows < batch, per, 0.0)

    # Per-tile partial sum, pre-scaled by 1/batch, into the resident (1,1) acc.
    out_ref[...] += jnp.sum(per, keepdims=True) * inv_b


def _vmem_limit_bytes():
    try:
        cap = pltpu.get_tpu_info().vmem_capacity_bytes
    except Exception:
        cap = 64 * 1024 * 1024
    return min(int(cap * 3 / 4), 100 * 1024 * 1024)


def trip_center_loss(x, centers, labels, other_labels, margin, incenter_weight,
                     *, b_tile=1024):
    """Pallas-backed forward of TripCenterLoss_margin (other_labels supplied)."""
    b, d = x.shape
    c = centers.shape[0]
    x_dtype = x.dtype
    itemsize = jnp.dtype(x_dtype).itemsize

    vmem_limit = _vmem_limit_bytes()

    # 8-sublane-aligned batch tile, shrunk until the per-step working set fits.
    b_t = min(_round_up(b_tile, 8), _round_up(b, 8))

    def step_bytes(bt):
        return (2 * bt * d * itemsize        # x tile, double-buffered
                + 2 * d * c * itemsize       # centers^T, double-buffered
                + 2 * bt * d * 4             # f32 view of x for ||x||^2
                + 4 * bt * c * 4)            # xc / classes / wm intermediates

    while b_t > 8 and step_bytes(b_t) > int(vmem_limit * 0.7):
        b_t = max(8, _round_up(b_t // 2, 8))

    grid = pl.cdiv(b, b_t)

    # Grid-invariant, hoisted once (cheap: centers is (C, d) only).
    ct = centers.astype(x_dtype).T                      # (d, C)
    cf32 = centers.astype(jnp.float32)
    cc = jnp.sum(cf32 * cf32, axis=1)[None, :]          # (1, C)

    lab = labels.astype(jnp.int32).reshape(b, 1)
    oth = other_labels.astype(jnp.int32).reshape(b, 1)
    params = jnp.array([[margin, incenter_weight]], dtype=jnp.float32)

    kernel = functools.partial(_trip_center_kernel, batch=b, inv_b=1.0 / b)

    out = pl.pallas_call(
        kernel,
        out_shape=jax.ShapeDtypeStruct((1, 1), jnp.float32),
        grid=(grid,),
        in_specs=[
            pl.BlockSpec((b_t, d), lambda i: (i, 0)),            # x batch tile
            pl.BlockSpec((d, c), lambda i: (0, 0)),              # centers^T (invariant)
            pl.BlockSpec((1, c), lambda i: (0, 0)),              # ||c||^2  (invariant)
            pl.BlockSpec((b_t, 1), lambda i: (i, 0)),            # labels tile
            pl.BlockSpec((b_t, 1), lambda i: (i, 0)),            # other-labels tile
            pl.BlockSpec(memory_space=pltpu.MemorySpace.SMEM),   # [margin, w]
        ],
        out_specs=pl.BlockSpec((1, 1), lambda i: (0, 0)),        # resident accumulator
        compiler_params=pltpu.CompilerParams(
            dimension_semantics=("arbitrary",),    # out block revisited every step
            vmem_limit_bytes=vmem_limit,
        ),
    )(x, ct, cc, lab, oth, params)

    return out[0, 0]


def other_label(key, labels, num_classes):
    # Deterministic JAX equivalent of the PyTorch Other_label helper
    # (random offset added to the label, wrapped mod num_classes).
    index = jax.random.randint(key, (labels.shape[0],), 0, num_classes,
                               dtype=jnp.int32)
    return (labels + index) % num_classes


def reference_loss(x, centers, labels, other_labels, margin, incenter_weight):
    # Pure-JAX f32 reference matching the PyTorch forward exactly.
    x = x.astype(jnp.float32)
    centers = centers.astype(jnp.float32)
    b = x.shape[0]
    distmat = (jnp.sum(x ** 2, axis=1, keepdims=True)
               + jnp.sum(centers ** 2, axis=1)[None, :]
               - 2.0 * x @ centers.T)
    dist = distmat[jnp.arange(b), labels]
    dist_other = distmat[jnp.arange(b), other_labels]
    per = jnp.maximum(margin + incenter_weight * dist
                      - (1.0 - incenter_weight) * dist_other, 0.0)
    return jnp.sum(per) / b


if __name__ == "__main__":
    margin = 1.0
    incenter_weight = 0.7
    key = jax.random.PRNGKey(0)

    # (batch, feat_dim, num_classes, b_tile, dtype, rtol, atol):
    #   1: aligned tiny shapes, single tile, f32
    #   2: batch not a multiple of 8 (partial block), f32
    #   3: multi-step grid (b_tile=8 -> 3 steps) with ragged tail masking, f32
    #   4: bf16 inputs passed straight through to the MXU (looser tolerance)
    cases = [
        (8, 32, 16, 1024, jnp.float32, 1e-5, 1e-5),
        (10, 32, 16, 1024, jnp.float32, 1e-5, 1e-5),
        (20, 48, 24, 8, jnp.float32, 1e-5, 1e-5),
        (16, 64, 12, 1024, jnp.bfloat16, 5e-2, 1.0),
    ]
    for batch, feat_dim, num_classes, b_tile, dtype, rtol, atol in cases:
        key, k_c, k_x, k_l, k_o = jax.random.split(key, 5)
        centers = jax.random.normal(k_c, (num_classes, feat_dim), dtype=jnp.float32)
        x = jax.random.normal(k_x, (batch, feat_dim), dtype=jnp.float32).astype(dtype)
        labels = jax.random.randint(k_l, (batch,), 0, num_classes, dtype=jnp.int32)
        other_labels = other_label(k_o, labels, num_classes)

        loss = trip_center_loss(x, centers, labels, other_labels,
                                margin, incenter_weight, b_tile=b_tile)
        loss = jax.block_until_ready(loss)

        ref = reference_loss(x, centers, labels, other_labels,
                             margin, incenter_weight)
        assert jnp.allclose(loss, ref, rtol=rtol, atol=atol), \
            (batch, feat_dim, num_classes, str(dtype), float(loss), float(ref))

    print("KERNEL_OK")
</pallas_src>

<mosaic_0001>
module attributes {stable_mosaic.version = 11 : i64} {
  func.func @_trip_center_kernel(%arg0: i32, %arg1: memref<8x32xf32, #tpu.memory_space<vmem>>, %arg2: memref<32x16xf32, #tpu.memory_space<vmem>>, %arg3: memref<1x16xf32, #tpu.memory_space<vmem>>, %arg4: memref<8x1xi32, #tpu.memory_space<vmem>>, %arg5: memref<8x1xi32, #tpu.memory_space<vmem>>, %arg6: memref<1x2xf32, #tpu.memory_space<smem>>, %arg7: memref<1x1xf32, #tpu.memory_space<vmem>>) attributes {dimension_semantics = [#tpu.dimension_semantics<arbitrary>], iteration_bounds = array<i64: 1>, scalar_prefetch = 0 : i64, scratch_operands = 0 : i64, tpu.core_type = #tpu.core_type<tc>, window_params = [{transform_indices = @transform_0, window_bounds = array<i64: 8, 32>}, {pipeline_mode = #tpu.pipeline_mode<synchronous>, transform_indices = @transform_1, window_bounds = array<i64: 32, 16>}, {pipeline_mode = #tpu.pipeline_mode<synchronous>, transform_indices = @transform_2, window_bounds = array<i64: 1, 16>}, {transform_indices = @transform_3, window_bounds = array<i64: 8, 1>}, {transform_indices = @transform_4, window_bounds = array<i64: 8, 1>}, {transform_indices = @transform_5, window_bounds = array<i64: 1, 2>}, {pipeline_mode = #tpu.pipeline_mode<synchronous>, transform_indices = @transform_6, window_bounds = array<i64: 1, 1>}]} {
    %c0_i32 = arith.constant 0 : i32
    %0 = arith.cmpi eq, %arg0, %c0_i32 : i32
    %1 = arith.extui %0 : i1 to i32
    %c0_i32_0 = arith.constant 0 : i32
    %2 = arith.cmpi ne, %1, %c0_i32_0 : i32
    scf.if %2 {
      %cst_30 = arith.constant 0.000000e+00 : f32
      %61 = vector.broadcast %cst_30 : f32 to vector<1x1xf32>
      %c0_31 = arith.constant 0 : index
      %c0_32 = arith.constant 0 : index
      %62 = vector.load %arg7[%c0_31, %c0_32] : memref<1x1xf32, #tpu.memory_space<vmem>>, vector<1x1xf32>
      tpu.vector_store %arg7[%c0_31, %c0_32], %61 {strides = array<i32>} : memref<1x1xf32, #tpu.memory_space<vmem>>, vector<1x1xf32>,
    } else {
    }
    %c0 = arith.constant 0 : index
    %c0_1 = arith.constant 0 : index
    %3 = vector.load %arg1[%c0, %c0_1] : memref<8x32xf32, #tpu.memory_space<vmem>>, vector<8x32xf32>
    %c0_2 = arith.constant 0 : index
    %c0_3 = arith.constant 0 : index
    %4 = vector.load %arg2[%c0_2, %c0_3] : memref<32x16xf32, #tpu.memory_space<vmem>>, vector<32x16xf32>
    %c0_4 = arith.constant 0 : index
    %c0_5 = arith.constant 0 : index
    %5 = vector.load %arg3[%c0_4, %c0_5] : memref<1x16xf32, #tpu.memory_space<vmem>>, vector<1x16xf32>
    %c0_6 = arith.constant 0 : index
    %c0_7 = arith.constant 0 : index
    %6 = vector.load %arg4[%c0_6, %c0_7] : memref<8x1xi32, #tpu.memory_space<vmem>>, vector<8x1xi32>
    %c0_8 = arith.constant 0 : index
    %c0_9 = arith.constant 0 : index
    %7 = vector.load %arg5[%c0_8, %c0_9] : memref<8x1xi32, #tpu.memory_space<vmem>>, vector<8x1xi32>
    %c0_10 = arith.constant 0 : index
    %c0_11 = arith.constant 0 : index
    %8 = memref.load %arg6[%c0_10, %c0_11] : memref<1x2xf32, #tpu.memory_space<smem>>
    %c0_12 = arith.constant 0 : index
    %c1 = arith.constant 1 : index
    %9 = memref.load %arg6[%c0_12, %c1] : memref<1x2xf32, #tpu.memory_space<smem>>
    %cst = arith.constant dense<0.000000e+00> : vector<8x16xf32>
    %10 = tpu.matmul %3, %4, %cst {dimension_numbers = #tpu.dot_dimension_numbers<[1], [0], [0], [1], [0, 0, 1, 1], [], []>} : vector<8x32xf32>, vector<32x16xf32>, vector<8x16xf32> -> vector<8x16xf32>
    %11 = arith.mulf %3, %3 : vector<8x32xf32>
    %cst_13 = arith.constant dense<0.000000e+00> : vector<8xf32>
    %12 = vector.multi_reduction <add>, %11, %cst_13 [1] : vector<8x32xf32> to vector<8xf32>
    %13 = vector.shape_cast %12 : vector<8xf32> to vector<8x1xf32>
    %14 = tpu.iota {dimensions = array<i32: 1>} : vector<8x16xi32>
    %15 = vector.broadcast %6 : vector<8x1xi32> to vector<8x16xi32>
    %16 = arith.cmpi eq, %14, %15 : vector<8x16xi32>
    %cst_14 = arith.constant 0.000000e+00 : f32
    %17 = vector.broadcast %9 : f32 to vector<8x16xf32>
    %18 = vector.broadcast %cst_14 : f32 to vector<8x16xf32>
    %19 = arith.select %16, %17, %18 : vector<8x16xi1>, vector<8x16xf32>
    %20 = vector.broadcast %7 : vector<8x1xi32> to vector<8x16xi32>
    %21 = arith.cmpi eq, %14, %20 : vector<8x16xi32>
    %cst_15 = arith.constant 1.000000e+00 : f32
    %22 = arith.subf %cst_15, %9 : f32
    %cst_16 = arith.constant 0.000000e+00 : f32
    %23 = vector.broadcast %22 : f32 to vector<8x16xf32>
    %24 = vector.broadcast %cst_16 : f32 to vector<8x16xf32>
    %25 = arith.select %21, %23, %24 : vector<8x16xi1>, vector<8x16xf32>
    %26 = arith.subf %19, %25 : vector<8x16xf32>
    %cst_17 = arith.constant 2.000000e+00 : f32
    %27 = vector.broadcast %cst_17 : f32 to vector<8x16xf32>
    %28 = arith.mulf %27, %10 : vector<8x16xf32>
    %29 = vector.broadcast %5 : vector<1x16xf32> to vector<8x16xf32>
    %30 = arith.subf %29, %28 : vector<8x16xf32>
    %31 = arith.mulf %26, %30 : vector<8x16xf32>
    %cst_18 = arith.constant dense<0.000000e+00> : vector<8xf32>
    %32 = vector.multi_reduction <add>, %31, %cst_18 [1] : vector<8x16xf32> to vector<8xf32>
    %33 = vector.shape_cast %32 : vector<8xf32> to vector<8x1xf32>
    %cst_19 = arith.constant 2.000000e+00 : f32
    %34 = arith.mulf %cst_19, %9 : f32
    %cst_20 = arith.constant 1.000000e+00 : f32
    %35 = arith.subf %34, %cst_20 : f32
    %36 = vector.broadcast %35 : f32 to vector<8x1xf32>
    %37 = arith.mulf %36, %13 : vector<8x1xf32>
    %38 = vector.broadcast %8 : f32 to vector<8x1xf32>
    %39 = arith.addf %38, %37 : vector<8x1xf32>
    %40 = arith.addf %39, %33 : vector<8x1xf32>
    %cst_21 = arith.constant 0.000000e+00 : f32
    %41 = vector.broadcast %cst_21 : f32 to vector<8x1xf32>
    %42 = arith.maximumf %40, %41 : vector<8x1xf32>
    %c8_i32 = arith.constant 8 : i32
    %43 = arith.muli %arg0, %c8_i32 : i32
    %44 = tpu.iota {dimensions = array<i32: 0>} : vector<8x1xi32>
    %45 = vector.broadcast %43 : i32 to vector<8x1xi32>
    %46 = arith.addi %45, %44 : vector<8x1xi32>
    %c8_i32_22 = arith.constant 8 : i32
    %47 = vector.broadcast %c8_i32_22 : i32 to vector<8x1xi32>
    %48 = arith.cmpi slt, %46, %47 : vector<8x1xi32>
    %cst_23 = arith.constant 0.000000e+00 : f32
    %49 = vector.broadcast %cst_23 : f32 to vector<8x1xf32>
    %50 = arith.select %48, %42, %49 : vector<8x1xi1>, vector<8x1xf32>
    %c0_24 = arith.constant 0 : index
    %c0_25 = arith.constant 0 : index
    %51 = vector.load %arg7[%c0_24, %c0_25] : memref<1x1xf32, #tpu.memory_space<vmem>>, vector<1x1xf32>
    %52 = vector.shape_cast %50 : vector<8x1xf32> to vector<1x8x1xf32>
    %cst_26 = arith.constant dense<0.000000e+00> : vector<1xf32>
    %53 = vector.multi_reduction <add>, %52, %cst_26 [1, 2] : vector<1x8x1xf32> to vector<1xf32>
    %54 = vector.shape_cast %53 : vector<1xf32> to vector<1x1x1xf32>
    %55 = vector.extract %54[0, 0, 0] : f32 from vector<1x1x1xf32>
    %56 = vector.broadcast %55 : f32 to vector<1x1xf32>
    %cst_27 = arith.constant 1.250000e-01 : f32
    %57 = vector.broadcast %cst_27 : f32 to vector<1x1xf32>
    %58 = arith.mulf %56, %57 : vector<1x1xf32>
    %59 = arith.addf %51, %58 : vector<1x1xf32>
    %c0_28 = arith.constant 0 : index
    %c0_29 = arith.constant 0 : index
    %60 = vector.load %arg7[%c0_28, %c0_29] : memref<1x1xf32, #tpu.memory_space<vmem>>, vector<1x1xf32>
    tpu.vector_store %arg7[%c0_28, %c0_29], %59 {strides = array<i32>} : memref<1x1xf32, #tpu.memory_space<vmem>>, vector<1x1xf32>,
    return
  }
  func.func @transform_0(%arg0: i32) -> (i32, i32) {
    %c0_i32 = arith.constant 0 : i32
    %c0_i32_0 = arith.constant 0 : i32
    return %arg0, %c0_i32 : i32, i32
  }
  func.func @transform_1(%arg0: i32) -> (i32, i32) {
    %c0_i32 = arith.constant 0 : i32
    %c0_i32_0 = arith.constant 0 : i32
    %c0_i32_1 = arith.constant 0 : i32
    return %c0_i32, %c0_i32_0 : i32, i32
  }
  func.func @transform_2(%arg0: i32) -> (i32, i32) {
    %c0_i32 = arith.constant 0 : i32
    %c0_i32_0 = arith.constant 0 : i32
    %c0_i32_1 = arith.constant 0 : i32
    return %c0_i32, %c0_i32_0 : i32, i32
  }
  func.func @transform_3(%arg0: i32) -> (i32, i32) {
    %c0_i32 = arith.constant 0 : i32
    %c0_i32_0 = arith.constant 0 : i32
    return %arg0, %c0_i32 : i32, i32
  }
  func.func @transform_4(%arg0: i32) -> (i32, i32) {
    %c0_i32 = arith.constant 0 : i32
    %c0_i32_0 = arith.constant 0 : i32
    return %arg0, %c0_i32 : i32, i32
  }
  func.func @transform_5(%arg0: i32) -> (i32, i32) {
    %c0_i32 = arith.constant 0 : i32
    %c0_i32_0 = arith.constant 0 : i32
    %c0_i32_1 = arith.constant 0 : i32
    return %c0_i32, %c0_i32_0 : i32, i32
  }
  func.func @transform_6(%arg0: i32) -> (i32, i32) {
    %c0_i32 = arith.constant 0 : i32
    %c0_i32_0 = arith.constant 0 : i32
    %c0_i32_1 = arith.constant 0 : i32
    return %c0_i32, %c0_i32_0 : i32, i32
  }
}

</mosaic_0001>

<llo_original>
// kernel: tpu_custom_call.1
$region0: #{tpu_custom_call.1}
  #allocation0 [shape = 'u32[]', space=smem, size = 0x4, offset = 0x4, fixed_abs, tag = 'smem constant byte address 0x4 - core index']
  #allocation1 [shape = 'u32[144,128]{1,0:T(1,128)}', space=vmem, size = 0x12000, scoped, tag = 'internal scratch']
  %s0 = inlined_call_operand.vmem [shape: f32[8,32], index: 0, kind: input, shape index: {}]
  %s1 = inlined_call_operand.vmem [shape: f32[32,16], index: 1, kind: input, shape index: {}]
  %s2 = inlined_call_operand.vmem [shape: f32[1,16], index: 2, kind: input, shape index: {}]
  %s3 = inlined_call_operand.vmem [shape: s32[8,1], index: 3, kind: input, shape index: {}]
  %s4 = inlined_call_operand.vmem [shape: s32[8,1], index: 4, kind: input, shape index: {}]
  %s5 = inlined_call_operand.vmem [shape: f32[1,2], index: 5, kind: input, shape index: {}]
  %s6 = inlined_call_operand.hbm [shape: f32[1,1], index: 6, kind: output, shape index: {}]
  %s7 = sld [smem:[#allocation0]]
  $region42: #{tpu_custom_call.1} parent=0
    _
  %s9 = ssub.s32 1, %s7
  %s10 = scalar_select 0, %s9, %s7
  $region1: #{tpu_custom_call.1} parent=0
    #allocation2 [shape = 'u8[512]{0}', space=smem, size = 0x200, scoped, tag = 'input window, operand 5, single buffered']
    #allocation3 [shape = 's32[1]{0}', space=sflag, size = 0x4, scoped, tag = 'scoped memory for tpu_custom_call.1']
    #allocation4 [shape = 's32[1]{0}', space=sflag, size = 0x4, scoped, tag = 'scoped memory for tpu_custom_call.1']
    #allocation5 [shape = 'u8[512]{0}', space=vmem, size = 0x400, scoped, tag = 'output window, operand 0, single buffered']
    %11 = vsyncpa [#allocation4], 0
    %12 = vsyncpa [#allocation3], 0
    // Predicated region
    $region2: #{tpu_custom_call.1} parent=1 // pred_check
      _
    $region3: #{tpu_custom_call.1} parent=1 // pred_check_branch
      %14 = sbr.rel (0) target = $region5
    $region4: #{tpu_custom_call.1} parent=1 // pred_region
      _
    $region5: #{tpu_custom_call.1} parent=1 // pred_fallthru
      _
    // Predicated region
    $region6: #{tpu_custom_call.1} parent=1 // pred_check
      _
    $region7: #{tpu_custom_call.1} parent=1 // pred_check_branch
      %16 = sbr.rel (0) target = $region9
    $region8: #{tpu_custom_call.1} parent=1 // pred_region
      _
    $region9: #{tpu_custom_call.1} parent=1 // pred_fallthru
      _
    // Predicated region
    $region10: #{tpu_custom_call.1} parent=1 // pred_check
      _
    $region11: #{tpu_custom_call.1} parent=1 // pred_check_branch
      %18 = sbr.rel (0) target = $region13
    $region12: #{tpu_custom_call.1} parent=1 // pred_region
      _
    $region13: #{tpu_custom_call.1} parent=1 // pred_fallthru
      _
    // Predicated region
    $region14: #{tpu_custom_call.1} parent=1 // pred_check
      _
    $region15: #{tpu_custom_call.1} parent=1 // pred_check_branch
      %20 = sbr.rel (0) target = $region17
    $region16: #{tpu_custom_call.1} parent=1 // pred_region
      _
    $region17: #{tpu_custom_call.1} parent=1 // pred_fallthru
      _
    // Predicated region
    $region18: #{tpu_custom_call.1} parent=1 // pred_check
      _
    $region19: #{tpu_custom_call.1} parent=1 // pred_check_branch
      %22 = sbr.rel (0) target = $region21
    $region20: #{tpu_custom_call.1} parent=1 // pred_region
      _
    $region21: #{tpu_custom_call.1} parent=1 // pred_fallthru
      _
    // Predicated region
    $region22: #{tpu_custom_call.1} parent=1 // pred_check
      _
    $region23: #{tpu_custom_call.1} parent=1 // pred_check_branch
      %24 = sbr.rel (0) target = $region25
    $region24: #{tpu_custom_call.1} parent=1 // pred_region
      %s26 = ssub.s32 16, 16
      %27 = vsyncadd [#allocation4], %s26
      %s29 = sshll.u32 %s5, 4
      %s30 = int_to_ptr.vmem [resolvable:$true] %s29
      %32 = dma.vmem_to_smem %s30, 16, [#allocation2], [#allocation4]
    $region25: #{tpu_custom_call.1} parent=1 // pred_fallthru
      _
    // Predicated region
    $region26: #{tpu_custom_call.1} parent=1 // pred_check
      _
    $region27: #{tpu_custom_call.1} parent=1 // pred_check_branch
      %34 = sbr.rel (0) target = $region29
    $region28: #{tpu_custom_call.1} parent=1 // pred_region
      %35 = dma.done [#allocation4], 16
    $region29: #{tpu_custom_call.1} parent=1 // pred_fallthru
      _
    %36 = sfence
    %p37 = scmp.eq.s32.totalorder 0, 0
    // Predicated region
    $region30: #{tpu_custom_call.1} parent=1 // pred_check
      %p38 = pneg %p37
    $region31: #{tpu_custom_call.1} parent=1 // pred_check_branch
      %40 = sbr.rel (%p38) target = $region33
    $region32: #{tpu_custom_call.1} parent=1 // pred_region
      %vm41 = vcmask 0
      %42 = vst.msk [vmem:[#allocation5] sm:$0x1] %vm41, 0.0
    $region33: #{tpu_custom_call.1} parent=1 // pred_fallthru
      _
    %v43 = vld [vmem:[%s0] sm:$0xff]
    %v44 = vld [vmem:[%s1] sm:$0xff]
    %v45 = vld [vmem:[%s1 + $0x8] sm:$0xff]
    %v46 = vld [vmem:[%s1 + $0x10] sm:$0xff]
    %v47 = vld [vmem:[%s1 + $0x18] sm:$0xff]
    %v48 = vld [vmem:[%s2] sm:$0x1]
    %v49 = vld [vmem:[%s3] sm:$0xff]
    %v50 = vld [vmem:[%s4] sm:$0xff]
    %s51 = sld [smem:[#allocation2]]
    %s52 = sld [smem:[#allocation2 + $0x1]]
    %vm53 = vcmask 261120
    %v55 = vsel %vm53, %v43, 0
    %57 = vmatprep.subr.mxu0 0.0
    %58 = vmatpush1.msra.mxu0 %v44
    %59 = vmatprep.subr.mxu0 0.0
    %60 = vmatpush1.msra.mxu0 %v45
    %61 = vmatprep.subr.mxu0 0.0
    %62 = vmatpush1.msra.mxu0 %v46
    %63 = vmatprep.subr.mxu0 0.0
    %64 = vmatpush1.msra.mxu0 %v47
    %65 = vmatprep.subr.mxu0 0.0
    %66 = vmatpush1.msra.mxu0 0.0
    %67 = vmatprep.subr.mxu0 0.0
    %68 = vmatpush1.msra.mxu0 0.0
    %69 = vmatprep.subr.mxu0 0.0
    %70 = vmatpush1.msra.mxu0 0.0
    %71 = vmatprep.subr.mxu0 0.0
    %72 = vmatpush1.msra.mxu0 0.0
    %73 = vmatprep.subr.mxu0 0.0
    %74 = vmatpush1.msra.mxu0 0.0
    %75 = vmatprep.subr.mxu0 0.0
    %76 = vmatpush1.msra.mxu0 0.0
    %77 = vmatprep.subr.mxu0 0.0
    %78 = vmatpush1.msra.mxu0 0.0
    %79 = vmatprep.subr.mxu0 0.0
    %80 = vmatpush1.msra.mxu0 0.0
    %81 = vmatprep.subr.mxu0 0.0
    %82 = vmatpush1.msra.mxu0 0.0
    %83 = vmatprep.subr.mxu0 0.0
    %84 = vmatpush1.msra.mxu0 0.0
    %85 = vmatprep.subr.mxu0 0.0
    %86 = vmatpush1.msra.mxu0 0.0
    %87 = vmatprep.subr.mxu0 0.0
    %88 = vmatpush1.msra.mxu0 0.0
    %89 = vmatprep.subr.mxu0 0.0
    %90 = vmatpush1.msra.mxu0 0.0
    %91 = vmatprep.subr.mxu0 0.0
    %92 = vmatpush1.msra.mxu0 0.0
    %93 = vmatprep.subr.mxu0 0.0
    %94 = vmatpush1.msra.mxu0 0.0
    %95 = vmatprep.subr.mxu0 0.0
    %96 = vmatpush1.msra.mxu0 0.0
    %97 = vmatprep.subr.mxu0 0.0
    %98 = vmatpush1.msra.mxu0 0.0
    %99 = vmatprep.subr.mxu0 0.0
    %100 = vmatpush1.msra.mxu0 0.0
    %101 = vmatprep.subr.mxu0 0.0
    %102 = vmatpush1.msra.mxu0 0.0
    %103 = vmatprep.subr.mxu0 0.0
    %104 = vmatpush1.msra.mxu0 0.0
    %105 = vmatprep.subr.mxu0 0.0
    %106 = vmatpush1.msra.mxu0 0.0
    %107 = vmatprep.subr.mxu0 0.0
    %108 = vmatpush1.msra.mxu0 0.0
    %109 = vmatprep.subr.mxu0 0.0
    %110 = vmatpush1.msra.mxu0 0.0
    %111 = vmatprep.subr.mxu0 0.0
    %112 = vmatpush1.msra.mxu0 0.0
    %113 = vmatprep.subr.mxu0 0.0
    %114 = vmatpush1.msra.mxu0 0.0
    %115 = vmatprep.subr.mxu0 0.0
    %116 = vmatpush1.msra.mxu0 0.0
    %117 = vmatprep.subr.mxu0 0.0
    %118 = vmatpush1.msra.mxu0 0.0
    %119 = vmatprep.subr.mxu0 0.0
    %120 = vmatpush1.msra.mxu0 0.0
    %121 = vmatprep.mubr.f32.mxu0 0.0
    %122 = vmatmul.mubr.f32.gmra.mrb[0].mxu0 %v55
    %v123 = vpop.f32.mrb[0].mxu0
    %v124 = vadd.f32 0.0, %v123
    %v125 = vpop.f32.mrb[0].mxu0
    %126 = vdwg.mxu0
    %v127 = vmul.f32 %v43, %v43
    %v128 = vsel %vm53, %v127, 0.0
    %129 = vadd.xlane.f32.xlu0 %v128
    %v130 = vpop.xlane.xlu0 %129
    %v131 = vlaneseq
    %v132 = vand.u32 %v131, 127
    %133 = vset.pattern.permute.xlu0 0
    %134 = vperm.xlu0 %133, %v49
    %v135 = vpop.permute.xlu0 %134
    %vm136 = vcmp.eq.s32.totalorder %v132, %v135
    %v137 = vstv %s52
    %v138 = vsel %vm136, %v137, 0.0
    %139 = vset.pattern.permute.xlu0 0
    %140 = vperm.xlu0 %139, %v50
    %v141 = vpop.permute.xlu0 %140
    %vm142 = vcmp.eq.s32.totalorder %v132, %v141
    %s143 = ssub.f32 1.0, %s52
    %v144 = vstv %s143
    %v145 = vsel %vm142, %v144, 0.0
    %v146 = vsub.f32 %v138, %v145
    %v147 = vmul.f32 %v124, 2.0
    %v149 = vlaneseq
    %v150 = vshrl.u32 %v149, 7
    %v151 = vsub.s32 0, %v150
    %v152 = vrot.slane %v48, %v151
    %v154 = vsub.f32 %v152, %v147
    %v155 = vmul.f32 %v146, %v154
    %vm156 = vcmask 130048
    %v157 = vsel %vm156, %v155, 0.0
    %158 = vadd.xlane.f32.xlu0 %v157
    %v159 = vpop.xlane.xlu0 %158
    %s160 = smul.f32 %s52, 2.0
    %s161 = ssub.f32 %s160, 1.0
    %v162 = vstv %s161
    %v163 = vmul.f32 %v162, %v130
    %v164 = vstv %s51
    %v165 = vadd.f32 %v164, %v163
    %v166 = vadd.f32 %v165, %v159
    %v167 = vmax.f32 %v166, 0.0
    %s168 = smul.u32 0, 8
    %v169 = vlaneseq
    %v170 = vshrl.u32 %v169, 7
    %v171 = vstv %s168
    %v172 = vadd.s32 %v171, %v170
    %vm173 = vcmp.lt.s32.totalorder %v172, 8
    %v174 = vsel %vm173, %v167, 0.0
    %v175 = vld [vmem:[#allocation5] sm:$0x1]
    %vm176 = vcmask 7168
    %v177 = vsel %vm176, %v174, 0.0
    %178 = vadd.xlane.f32.xlu0 %v177
    %v179 = vpop.xlane.xlu0 %178
    %v180 = vrot.slane %v179, 4
    %v181 = vadd.f32 %v179, %v180
    %v182 = vrot.slane %v181, 2
    %v183 = vadd.f32 %v181, %v182
    %v184 = vrot.slane %v183, 1
    %v185 = vadd.f32 %v183, %v184
    %s186 = vtos %v185
    %v187 = vstv %s186
    %v188 = vmul.f32 %v187, 0.125
    %v189 = vadd.f32 %v175, %v188
    %vm190 = vcmask 0
    %191 = vst.msk [vmem:[#allocation5] sm:$0x1] %vm190, %v189
    // Predicated region
    $region34: #{tpu_custom_call.1} parent=1 // pred_check
      _
    $region35: #{tpu_custom_call.1} parent=1 // pred_check_branch
      %193 = sbr.rel (0) target = $region37
    $region36: #{tpu_custom_call.1} parent=1 // pred_region
      %s195 = ssub.s32 16, 16
      %196 = vsyncadd [#allocation3], %s195
      %s198 = sshll.u32 [#allocation5], 4
      %s199 = int_to_ptr.vmem [resolvable:$true] %s198
      %201 = dma.vmem_to_hbm [thread:$0]  %s199, 16, %s6, [#allocation3]
    $region37: #{tpu_custom_call.1} parent=1 // pred_fallthru
      _
    // Predicated region
    $region38: #{tpu_custom_call.1} parent=1 // pred_check
      _
    $region39: #{tpu_custom_call.1} parent=1 // pred_check_branch
      %203 = sbr.rel (0) target = $region41
    $region40: #{tpu_custom_call.1} parent=1 // pred_region
      %204 = dma.done [#allocation3], 16
    $region41: #{tpu_custom_call.1} parent=1 // pred_fallthru
      _
    %205 = vsyncpa [#allocation3], 1
    %206 = vsyncpa [#allocation4], 1

</llo_original>
